<compile_context>
chip_gen: v5e
topology: v5e:2x2
jax: 0.10.0
libtpu: 0.0.40
codegen_flags: <defaults>
</compile_context>

<pallas_src>
import functools

import jax
import jax.numpy as jnp
from jax.experimental import pallas as pl
from jax.experimental.pallas import tpu as pltpu

FIELD_EPS = 1e-7  # Quadratic_Field(1e-07)


def _pinn_kernel(f, sz_ref, w1_ref, b1_ref, w2_ref, b2_ref, w3_ref, b3_ref,
                 o_ref):
    sz = sz_ref[...]                                   # (T, F+1) float32
    x = sz[:, 0:1]
    y = sz[:, 1:2]
    z = sz[:, f:f + 1]

    # synthetic quadratic B field (Bx, By, Bz), each (T, 1), f32 on the VPU
    bx = FIELD_EPS * (x * y)
    by = FIELD_EPS * (x * z)
    bz = FIELD_EPS * (x * x - y * y)

    # ---- layer 1 entirely on the VPU: K=F+3=8 is far too narrow for the MXU.
    w1 = w1_ref[...]                                   # (F+3, 64) float32
    h1 = b1_ref[...]                                   # (1, 64) -> broadcast
    for k in range(f):                                 # statically unrolled
        h1 = h1 + sz[:, k:k + 1] * w1[k:k + 1, :]
    h1 = h1 + bx * w1[f:f + 1, :] + by * w1[f + 1:f + 2, :] \
             + bz * w1[f + 2:f + 3, :]
    h1 = jnp.maximum(h1, 0.0)

    # ---- layer 2 -> ReLU : bf16 MXU operands, f32 accumulation
    h2 = jnp.dot(h1.astype(jnp.bfloat16), w2_ref[...],
                 preferred_element_type=jnp.float32)
    h2 = jnp.maximum(h2 + b2_ref[...], 0.0)

    # ---- layer 3 (no activation) : bf16 MXU operands, f32 accumulation
    o_ref[...] = (jnp.dot(h2.astype(jnp.bfloat16), w3_ref[...],
                          preferred_element_type=jnp.float32)
                  + b3_ref[...])


def neural_net_forward(s, z, params, *, tile_n=2048):
    """s: (N, F) float32, z: (N,) float32.  Returns (N, 20) float32."""
    n, f = s.shape
    w1, b1, w2, b2, w3, b3 = params
    out_dim = w3.shape[1]

    # merge s and z into one lane-dense operand (removes the (N,1) z stream)
    sz = jnp.concatenate(
        [s.astype(jnp.float32), z.reshape(n, 1).astype(jnp.float32)], axis=1)

    # weight prep (done once, outside the hot path):
    #   layer-1 weights stay f32 (consumed by the VPU as rank-1 FMAs),
    #   layer-2/3 weights go to the MXU as bf16.
    w1_f32 = w1.astype(jnp.float32)                    # (F+3, 64)
    b1_f32 = b1.astype(jnp.float32)
    w2_bf = w2.astype(jnp.bfloat16)
    b2_f32 = b2.astype(jnp.float32)
    w3_bf = w3.astype(jnp.bfloat16)
    b3_f32 = b3.astype(jnp.float32)

    # tile selection:
    #  * hardware-legal: multiple of 8 (blocks are f32)
    #  * span both v7x TensorCores: ensure >= 2 grid steps when possible
    n8 = ((n + 7) // 8) * 8
    tile = min(int(tile_n), n8)
    if n8 > 8:
        half = (((n8 + 1) // 2) + 7) // 8 * 8          # round_to_8(ceil(n8/2))
        tile = min(tile, half)
    tile = max(8, (tile // 8) * 8)
    n_pad = pl.cdiv(n8, tile) * tile
    if n_pad != n:
        sz = jnp.pad(sz, ((0, n_pad - n), (0, 0)))

    def resident(arr):
        # same block index every grid step -> stays in VMEM, no re-DMA
        return pl.BlockSpec(arr.shape, lambda i: (0, 0))

    out = pl.pallas_call(
        functools.partial(_pinn_kernel, f),
        out_shape=jax.ShapeDtypeStruct((n_pad, out_dim), jnp.float32),
        grid=(n_pad // tile,),
        in_specs=[
            pl.BlockSpec((tile, f + 1), lambda i: (i, 0)),
            resident(w1_f32), resident(b1_f32),
            resident(w2_bf), resident(b2_f32),
            resident(w3_bf), resident(b3_f32),
        ],
        out_specs=pl.BlockSpec((tile, out_dim), lambda i: (i, 0)),
        compiler_params=pltpu.CompilerParams(
            dimension_semantics=("parallel",)),
    )(sz, w1_f32, b1_f32, w2_bf, b2_f32, w3_bf, b3_f32)
    return out[:n]


def init_linear(key, fan_in, fan_out):
    """Deterministic init matching nn.Linear shapes (stored as (in, out))."""
    kw, kb = jax.random.split(key)
    bound = 1.0 / jnp.sqrt(float(fan_in))
    w = jax.random.uniform(kw, (fan_in, fan_out), jnp.float32, -bound, bound)
    b = jax.random.uniform(kb, (1, fan_out), jnp.float32, -bound, bound)
    return w, b


def reference_forward(s, z, params):
    """Pure-JAX f32 reference of the PyTorch forward."""
    w1, b1, w2, b2, w3, b3 = params
    x, y = s[:, 0:1], s[:, 1:2]
    z2 = z.reshape(-1, 1)
    B = jnp.concatenate(
        [FIELD_EPS * (x * y), FIELD_EPS * (x * z2),
         FIELD_EPS * (x * x - y * y)], axis=1)
    h = jnp.concatenate([s, B], axis=1)
    h = jnp.maximum(h @ w1 + b1, 0.0)
    h = jnp.maximum(h @ w2 + b2, 0.0)
    return h @ w3 + b3


if __name__ == "__main__":
    key = jax.random.PRNGKey(0)
    k_s, k_z, k1, k2, k3 = jax.random.split(key, 5)

    N, F = 200, 5                       # input_size = F + 3 = 8
    input_size = F + 3

    s = jax.random.normal(k_s, (N, F), jnp.float32)
    z = jax.random.normal(k_z, (N,), jnp.float32)

    params = (*init_linear(k1, input_size, 64),
              *init_linear(k2, 64, 32),
              *init_linear(k3, 32, 20))

    # tile_n=64 exercises the multi-tile pipeline + ragged-batch padding path
    out = neural_net_forward(s, z, params, tile_n=64)
    out = jax.block_until_ready(out)

    ref = reference_forward(s, z, params)
    assert out.shape == (N, 20)
    # bf16 MXU operands (f32 accumulation) vs f32 reference: ~1% relative
    # error expected, so the parity tolerance is relaxed accordingly.
    assert jnp.allclose(out, ref, atol=5e-2, rtol=5e-2), (
        float(jnp.max(jnp.abs(out - ref))))

    print("KERNEL_OK")
</pallas_src>

<mosaic_0001>
module attributes {stable_mosaic.version = 11 : i64} {
  func.func @_pinn_kernel(%arg0: i32, %arg1: memref<64x6xf32, #tpu.memory_space<vmem>>, %arg2: memref<8x64xf32, #tpu.memory_space<vmem>>, %arg3: memref<1x64xf32, #tpu.memory_space<vmem>>, %arg4: memref<64x32xbf16, #tpu.memory_space<vmem>>, %arg5: memref<1x32xf32, #tpu.memory_space<vmem>>, %arg6: memref<32x20xbf16, #tpu.memory_space<vmem>>, %arg7: memref<1x20xf32, #tpu.memory_space<vmem>>, %arg8: memref<64x20xf32, #tpu.memory_space<vmem>>) attributes {dimension_semantics = [#tpu.dimension_semantics<parallel>], iteration_bounds = array<i64: 4>, scalar_prefetch = 0 : i64, scratch_operands = 0 : i64, tpu.core_type = #tpu.core_type<tc>, window_params = [{transform_indices = @transform_0, window_bounds = array<i64: 64, 6>}, {pipeline_mode = #tpu.pipeline_mode<synchronous>, transform_indices = @transform_1, window_bounds = array<i64: 8, 64>}, {pipeline_mode = #tpu.pipeline_mode<synchronous>, transform_indices = @transform_2, window_bounds = array<i64: 1, 64>}, {pipeline_mode = #tpu.pipeline_mode<synchronous>, transform_indices = @transform_3, window_bounds = array<i64: 64, 32>}, {pipeline_mode = #tpu.pipeline_mode<synchronous>, transform_indices = @transform_4, window_bounds = array<i64: 1, 32>}, {pipeline_mode = #tpu.pipeline_mode<synchronous>, transform_indices = @transform_5, window_bounds = array<i64: 32, 20>}, {pipeline_mode = #tpu.pipeline_mode<synchronous>, transform_indices = @transform_6, window_bounds = array<i64: 1, 20>}, {transform_indices = @transform_7, window_bounds = array<i64: 64, 20>}]} {
    %c0 = arith.constant 0 : index
    %c0_0 = arith.constant 0 : index
    %0 = vector.load %arg1[%c0, %c0_0] : memref<64x6xf32, #tpu.memory_space<vmem>>, vector<64x6xf32>
    %1 = vector.extract_strided_slice %0 {offsets = [0, 0], sizes = [64, 1], strides = [1, 1]} : vector<64x6xf32> to vector<64x1xf32>
    %2 = vector.extract_strided_slice %0 {offsets = [0, 1], sizes = [64, 1], strides = [1, 1]} : vector<64x6xf32> to vector<64x1xf32>
    %3 = vector.extract_strided_slice %0 {offsets = [0, 5], sizes = [64, 1], strides = [1, 1]} : vector<64x6xf32> to vector<64x1xf32>
    %4 = arith.mulf %1, %2 : vector<64x1xf32>
    %cst = arith.constant 1.000000e-07 : f32
    %5 = vector.broadcast %cst : f32 to vector<64x1xf32>
    %6 = arith.mulf %5, %4 : vector<64x1xf32>
    %7 = arith.mulf %1, %3 : vector<64x1xf32>
    %cst_1 = arith.constant 1.000000e-07 : f32
    %8 = vector.broadcast %cst_1 : f32 to vector<64x1xf32>
    %9 = arith.mulf %8, %7 : vector<64x1xf32>
    %10 = arith.mulf %1, %1 : vector<64x1xf32>
    %11 = arith.mulf %2, %2 : vector<64x1xf32>
    %12 = arith.subf %10, %11 : vector<64x1xf32>
    %cst_2 = arith.constant 1.000000e-07 : f32
    %13 = vector.broadcast %cst_2 : f32 to vector<64x1xf32>
    %14 = arith.mulf %13, %12 : vector<64x1xf32>
    %c0_3 = arith.constant 0 : index
    %c0_4 = arith.constant 0 : index
    %15 = vector.load %arg2[%c0_3, %c0_4] : memref<8x64xf32, #tpu.memory_space<vmem>>, vector<8x64xf32>
    %c0_5 = arith.constant 0 : index
    %c0_6 = arith.constant 0 : index
    %16 = vector.load %arg3[%c0_5, %c0_6] : memref<1x64xf32, #tpu.memory_space<vmem>>, vector<1x64xf32>
    %17 = vector.extract_strided_slice %0 {offsets = [0, 0], sizes = [64, 1], strides = [1, 1]} : vector<64x6xf32> to vector<64x1xf32>
    %18 = vector.extract_strided_slice %15 {offsets = [0, 0], sizes = [1, 64], strides = [1, 1]} : vector<8x64xf32> to vector<1x64xf32>
    %19 = vector.broadcast %17 : vector<64x1xf32> to vector<64x64xf32>
    %20 = vector.broadcast %18 : vector<1x64xf32> to vector<64x64xf32>
    %21 = arith.mulf %19, %20 : vector<64x64xf32>
    %22 = vector.broadcast %16 : vector<1x64xf32> to vector<64x64xf32>
    %23 = arith.addf %22, %21 : vector<64x64xf32>
    %24 = vector.extract_strided_slice %0 {offsets = [0, 1], sizes = [64, 1], strides = [1, 1]} : vector<64x6xf32> to vector<64x1xf32>
    %25 = vector.extract_strided_slice %15 {offsets = [1, 0], sizes = [1, 64], strides = [1, 1]} : vector<8x64xf32> to vector<1x64xf32>
    %26 = vector.broadcast %24 : vector<64x1xf32> to vector<64x64xf32>
    %27 = vector.broadcast %25 : vector<1x64xf32> to vector<64x64xf32>
    %28 = arith.mulf %26, %27 : vector<64x64xf32>
    %29 = arith.addf %23, %28 : vector<64x64xf32>
    %30 = vector.extract_strided_slice %0 {offsets = [0, 2], sizes = [64, 1], strides = [1, 1]} : vector<64x6xf32> to vector<64x1xf32>
    %31 = vector.extract_strided_slice %15 {offsets = [2, 0], sizes = [1, 64], strides = [1, 1]} : vector<8x64xf32> to vector<1x64xf32>
    %32 = vector.broadcast %30 : vector<64x1xf32> to vector<64x64xf32>
    %33 = vector.broadcast %31 : vector<1x64xf32> to vector<64x64xf32>
    %34 = arith.mulf %32, %33 : vector<64x64xf32>
    %35 = arith.addf %29, %34 : vector<64x64xf32>
    %36 = vector.extract_strided_slice %0 {offsets = [0, 3], sizes = [64, 1], strides = [1, 1]} : vector<64x6xf32> to vector<64x1xf32>
    %37 = vector.extract_strided_slice %15 {offsets = [3, 0], sizes = [1, 64], strides = [1, 1]} : vector<8x64xf32> to vector<1x64xf32>
    %38 = vector.broadcast %36 : vector<64x1xf32> to vector<64x64xf32>
    %39 = vector.broadcast %37 : vector<1x64xf32> to vector<64x64xf32>
    %40 = arith.mulf %38, %39 : vector<64x64xf32>
    %41 = arith.addf %35, %40 : vector<64x64xf32>
    %42 = vector.extract_strided_slice %0 {offsets = [0, 4], sizes = [64, 1], strides = [1, 1]} : vector<64x6xf32> to vector<64x1xf32>
    %43 = vector.extract_strided_slice %15 {offsets = [4, 0], sizes = [1, 64], strides = [1, 1]} : vector<8x64xf32> to vector<1x64xf32>
    %44 = vector.broadcast %42 : vector<64x1xf32> to vector<64x64xf32>
    %45 = vector.broadcast %43 : vector<1x64xf32> to vector<64x64xf32>
    %46 = arith.mulf %44, %45 : vector<64x64xf32>
    %47 = arith.addf %41, %46 : vector<64x64xf32>
    %48 = vector.extract_strided_slice %15 {offsets = [5, 0], sizes = [1, 64], strides = [1, 1]} : vector<8x64xf32> to vector<1x64xf32>
    %49 = vector.broadcast %6 : vector<64x1xf32> to vector<64x64xf32>
    %50 = vector.broadcast %48 : vector<1x64xf32> to vector<64x64xf32>
    %51 = arith.mulf %49, %50 : vector<64x64xf32>
    %52 = arith.addf %47, %51 : vector<64x64xf32>
    %53 = vector.extract_strided_slice %15 {offsets = [6, 0], sizes = [1, 64], strides = [1, 1]} : vector<8x64xf32> to vector<1x64xf32>
    %54 = vector.broadcast %9 : vector<64x1xf32> to vector<64x64xf32>
    %55 = vector.broadcast %53 : vector<1x64xf32> to vector<64x64xf32>
    %56 = arith.mulf %54, %55 : vector<64x64xf32>
    %57 = arith.addf %52, %56 : vector<64x64xf32>
    %58 = vector.extract_strided_slice %15 {offsets = [7, 0], sizes = [1, 64], strides = [1, 1]} : vector<8x64xf32> to vector<1x64xf32>
    %59 = vector.broadcast %14 : vector<64x1xf32> to vector<64x64xf32>
    %60 = vector.broadcast %58 : vector<1x64xf32> to vector<64x64xf32>
    %61 = arith.mulf %59, %60 : vector<64x64xf32>
    %62 = arith.addf %57, %61 : vector<64x64xf32>
    %cst_7 = arith.constant 0.000000e+00 : f32
    %63 = vector.broadcast %cst_7 : f32 to vector<64x64xf32>
    %64 = arith.maximumf %62, %63 : vector<64x64xf32>
    %65 = arith.truncf %64 : vector<64x64xf32> to vector<64x64xbf16>
    %c0_8 = arith.constant 0 : index
    %c0_9 = arith.constant 0 : index
    %66 = vector.load %arg4[%c0_8, %c0_9] : memref<64x32xbf16, #tpu.memory_space<vmem>>, vector<64x32xbf16>
    %cst_10 = arith.constant dense<0.000000e+00> : vector<64x32xf32>
    %67 = tpu.matmul %65, %66, %cst_10 {dimension_numbers = #tpu.dot_dimension_numbers<[1], [0], [0], [1], [0, 0, 1, 1], [], []>} : vector<64x64xbf16>, vector<64x32xbf16>, vector<64x32xf32> -> vector<64x32xf32>
    %c0_11 = arith.constant 0 : index
    %c0_12 = arith.constant 0 : index
    %68 = vector.load %arg5[%c0_11, %c0_12] : memref<1x32xf32, #tpu.memory_space<vmem>>, vector<1x32xf32>
    %69 = vector.broadcast %68 : vector<1x32xf32> to vector<64x32xf32>
    %70 = arith.addf %67, %69 : vector<64x32xf32>
    %cst_13 = arith.constant 0.000000e+00 : f32
    %71 = vector.broadcast %cst_13 : f32 to vector<64x32xf32>
    %72 = arith.maximumf %70, %71 : vector<64x32xf32>
    %73 = arith.truncf %72 : vector<64x32xf32> to vector<64x32xbf16>
    %c0_14 = arith.constant 0 : index
    %c0_15 = arith.constant 0 : index
    %74 = vector.load %arg6[%c0_14, %c0_15] : memref<32x20xbf16, #tpu.memory_space<vmem>>, vector<32x20xbf16>
    %cst_16 = arith.constant dense<0.000000e+00> : vector<64x20xf32>
    %75 = tpu.matmul %73, %74, %cst_16 {dimension_numbers = #tpu.dot_dimension_numbers<[1], [0], [0], [1], [0, 0, 1, 1], [], []>} : vector<64x32xbf16>, vector<32x20xbf16>, vector<64x20xf32> -> vector<64x20xf32>
    %c0_17 = arith.constant 0 : index
    %c0_18 = arith.constant 0 : index
    %76 = vector.load %arg7[%c0_17, %c0_18] : memref<1x20xf32, #tpu.memory_space<vmem>>, vector<1x20xf32>
    %77 = vector.broadcast %76 : vector<1x20xf32> to vector<64x20xf32>
    %78 = arith.addf %75, %77 : vector<64x20xf32>
    %c0_19 = arith.constant 0 : index
    %c0_20 = arith.constant 0 : index
    %79 = vector.load %arg8[%c0_19, %c0_20] : memref<64x20xf32, #tpu.memory_space<vmem>>, vector<64x20xf32>
    tpu.vector_store %arg8[%c0_19, %c0_20], %78 {strides = array<i32>} : memref<64x20xf32, #tpu.memory_space<vmem>>, vector<64x20xf32>,
    return
  }
  func.func @transform_0(%arg0: i32) -> (i32, i32) {
    %c0_i32 = arith.constant 0 : i32
    %c0_i32_0 = arith.constant 0 : i32
    return %arg0, %c0_i32 : i32, i32
  }
  func.func @transform_1(%arg0: i32) -> (i32, i32) {
    %c0_i32 = arith.constant 0 : i32
    %c0_i32_0 = arith.constant 0 : i32
    %c0_i32_1 = arith.constant 0 : i32
    return %c0_i32, %c0_i32_0 : i32, i32
  }
  func.func @transform_2(%arg0: i32) -> (i32, i32) {
    %c0_i32 = arith.constant 0 : i32
    %c0_i32_0 = arith.constant 0 : i32
    %c0_i32_1 = arith.constant 0 : i32
    return %c0_i32, %c0_i32_0 : i32, i32
  }
  func.func @transform_3(%arg0: i32) -> (i32, i32) {
    %c0_i32 = arith.constant 0 : i32
    %c0_i32_0 = arith.constant 0 : i32
    %c0_i32_1 = arith.constant 0 : i32
    return %c0_i32, %c0_i32_0 : i32, i32
  }
  func.func @transform_4(%arg0: i32) -> (i32, i32) {
    %c0_i32 = arith.constant 0 : i32
    %c0_i32_0 = arith.constant 0 : i32
    %c0_i32_1 = arith.constant 0 : i32
    return %c0_i32, %c0_i32_0 : i32, i32
  }
  func.func @transform_5(%arg0: i32) -> (i32, i32) {
    %c0_i32 = arith.constant 0 : i32
    %c0_i32_0 = arith.constant 0 : i32
    %c0_i32_1 = arith.constant 0 : i32
    return %c0_i32, %c0_i32_0 : i32, i32
  }
  func.func @transform_6(%arg0: i32) -> (i32, i32) {
    %c0_i32 = arith.constant 0 : i32
    %c0_i32_0 = arith.constant 0 : i32
    %c0_i32_1 = arith.constant 0 : i32
    return %c0_i32, %c0_i32_0 : i32, i32
  }
  func.func @transform_7(%arg0: i32) -> (i32, i32) {
    %c0_i32 = arith.constant 0 : i32
    %c0_i32_0 = arith.constant 0 : i32
    return %arg0, %c0_i32 : i32, i32
  }
}

</mosaic_0001>

<llo_original>
// kernel: tpu_custom_call.1
$region0: #{tpu_custom_call.1}
  #allocation0 [shape = 'u32[]', space=smem, size = 0x4, offset = 0x4, fixed_abs, tag = 'smem constant byte address 0x4 - core index']
  #allocation1 [shape = 'u32[72,128]{1,0:T(1,128)}', space=vmem, size = 0x9000, scoped, tag = 'internal scratch']
  %s0 = inlined_call_operand.vmem [shape: f32[256,6], index: 0, kind: input, shape index: {}]
  %s1 = inlined_call_operand.vmem [shape: f32[8,64], index: 1, kind: input, shape index: {}]
  %s2 = inlined_call_operand.vmem [shape: f32[1,64], index: 2, kind: input, shape index: {}]
  %s3 = inlined_call_operand.vmem [shape: bf16[64,32], index: 3, kind: input, shape index: {}]
  %s4 = inlined_call_operand.vmem [shape: f32[1,32], index: 4, kind: input, shape index: {}]
  %s5 = inlined_call_operand.vmem [shape: bf16[32,20], index: 5, kind: input, shape index: {}]
  %s6 = inlined_call_operand.vmem [shape: f32[1,20], index: 6, kind: input, shape index: {}]
  %s7 = inlined_call_operand.vmem [shape: f32[256,20], index: 7, kind: output, shape index: {}]
  %s8 = sld [smem:[#allocation0]]
  $region61: #{tpu_custom_call.1} parent=0
    _
  %s10 = ssub.s32 1, %s8
  %s11 = scalar_select 0, %s10, %s8
  loop: start=0, step=1, limit=6
  $region2: #{tpu_custom_call.1} parent=0 // loop_pre_header
    _
  $region3: #{tpu_custom_call.1} parent=0 // loop_header
    %s13 = sphi 0, %s17
    %p14 = scmp.ge.s32.totalorder %s13, 6
    %s23 = sphi 0, %s25
    %s26 = sphi 0, %s23
    %s27 = sphi 0, %s26
    %s43 = sphi 0, %s27
    %s47 = sphi 0, %s47
    %s49 = sphi 0, %s47
    %s50 = sphi 0, %s49
    %s64 = sphi 0, %s50
    %s68 = sphi 0, %s68
    %s70 = sphi 0, %s68
    %s71 = sphi 0, %s70
    %s85 = sphi 0, %s71
    %s89 = sphi 0, %s89
    %s91 = sphi 0, %s89
    %s92 = sphi 0, %s91
    %s106 = sphi 0, %s92
    %s110 = sphi 0, %s110
    %s112 = sphi 0, %s110
    %s113 = sphi 0, %s112
    %s127 = sphi 0, %s113
    %s131 = sphi 0, %s131
    %s133 = sphi 0, %s131
    %s134 = sphi 0, %s133
    %s148 = sphi 0, %s134
    %s152 = sphi 0, %s152
    %s154 = sphi 0, %s152
    %s155 = sphi 0, %s154
    %s169 = sphi 0, %s155
    %s175 = sphi 0, %s177
    %s178 = sphi 0, %s175
    %s179 = sphi 0, %s178
    %s195 = sphi 0, %s179
  $region4: #{tpu_custom_call.1} parent=0 // loop_header_branch
    %16 = sbr.rel (%p14) target = $region8
  $region5: #{tpu_custom_call.1} parent=0 // loop_body
    %s18 = ssub.s32 %s13, 1
    %s19 = ssub.s32 %s13, 2
    %s20 = sadd.s32 %s13, 1
    %s21 = ssub.s32 %s13, %s20
    %p22 = scmp.eq.s32.totalorder %s21, 0
    %s24 = sadd.s32 %s23, 1
    %s25 = scalar_select %p22, %s23, %s24
    %p28 = pneg %p22
    %p29 = scmp.eq.s32.totalorder %s13, 3
    %p30 = por %p28, %p29
    %p31 = scmp.ne.s32.totalorder %s23, %s26
    %p32 = scmp.eq.s32.totalorder %s13, 0
    %p33 = por %p31, %p32
    %p34 = scmp.ne.s32.totalorder %s23, %s26
    %p35 = scmp.eq.s32.totalorder %s18, 3
    %p36 = por %p34, %p35
    %p37 = scmp.ne.s32.totalorder %s26, %s27
    %p38 = scmp.eq.s32.totalorder %s18, 0
    %p39 = por %p37, %p38
    %p40 = scmp.ne.s32.totalorder %s26, %s27
    %p41 = scmp.eq.s32.totalorder %s19, 3
    %p42 = por %p40, %p41
    %p44 = scmp.ne.s32.totalorder %s27, %s43
    %p45 = scmp.eq.s32.totalorder %s19, 0
    %p46 = por %p44, %p45
    %s48 = sadd.s32 %s47, 1
    %p51 = scmp.eq.s32.totalorder %s13, 3
    %p52 = scmp.ne.s32.totalorder %s47, %s49
    %p53 = scmp.eq.s32.totalorder %s13, 0
    %p54 = por %p52, %p53
    %p55 = scmp.ne.s32.totalorder %s47, %s49
    %p56 = scmp.eq.s32.totalorder %s18, 3
    %p57 = por %p55, %p56
    %p58 = scmp.ne.s32.totalorder %s49, %s50
    %p59 = scmp.eq.s32.totalorder %s18, 0
    %p60 = por %p58, %p59
    %p61 = scmp.ne.s32.totalorder %s49, %s50
    %p62 = scmp.eq.s32.totalorder %s19, 3
    %p63 = por %p61, %p62
    %p65 = scmp.ne.s32.totalorder %s50, %s64
    %p66 = scmp.eq.s32.totalorder %s19, 0
    %p67 = por %p65, %p66
    %s69 = sadd.s32 %s68, 1
    %p72 = scmp.eq.s32.totalorder %s13, 3
    %p73 = scmp.ne.s32.totalorder %s68, %s70
    %p74 = scmp.eq.s32.totalorder %s13, 0
    %p75 = por %p73, %p74
    %p76 = scmp.ne.s32.totalorder %s68, %s70
    %p77 = scmp.eq.s32.totalorder %s18, 3
    %p78 = por %p76, %p77
    %p79 = scmp.ne.s32.totalorder %s70, %s71
    %p80 = scmp.eq.s32.totalorder %s18, 0
    %p81 = por %p79, %p80
    %p82 = scmp.ne.s32.totalorder %s70, %s71
    %p83 = scmp.eq.s32.totalorder %s19, 3
    %p84 = por %p82, %p83
    %p86 = scmp.ne.s32.totalorder %s71, %s85
    %p87 = scmp.eq.s32.totalorder %s19, 0
    %p88 = por %p86, %p87
    %s90 = sadd.s32 %s89, 1
    %p93 = scmp.eq.s32.totalorder %s13, 3
    %p94 = scmp.ne.s32.totalorder %s89, %s91
    %p95 = scmp.eq.s32.totalorder %s13, 0
    %p96 = por %p94, %p95
    %p97 = scmp.ne.s32.totalorder %s89, %s91
    %p98 = scmp.eq.s32.totalorder %s18, 3
    %p99 = por %p97, %p98
    %p100 = scmp.ne.s32.totalorder %s91, %s92
    %p101 = scmp.eq.s32.totalorder %s18, 0
    %p102 = por %p100, %p101
    %p103 = scmp.ne.s32.totalorder %s91, %s92
    %p104 = scmp.eq.s32.totalorder %s19, 3
    %p105 = por %p103, %p104
    %p107 = scmp.ne.s32.totalorder %s92, %s106
    %p108 = scmp.eq.s32.totalorder %s19, 0
    %p109 = por %p107, %p108
    %s111 = sadd.s32 %s110, 1
    %p114 = scmp.eq.s32.totalorder %s13, 3
    %p115 = scmp.ne.s32.totalorder %s110, %s112
    %p116 = scmp.eq.s32.totalorder %s13, 0
    %p117 = por %p115, %p116
    %p118 = scmp.ne.s32.totalorder %s110, %s112
    %p119 = scmp.eq.s32.totalorder %s18, 3
    %p120 = por %p118, %p119
    %p121 = scmp.ne.s32.totalorder %s112, %s113
    %p122 = scmp.eq.s32.totalorder %s18, 0
    %p123 = por %p121, %p122
    %p124 = scmp.ne.s32.totalorder %s112, %s113
    %p125 = scmp.eq.s32.totalorder %s19, 3
    %p126 = por %p124, %p125
    %p128 = scmp.ne.s32.totalorder %s113, %s127
    %p129 = scmp.eq.s32.totalorder %s19, 0
    %p130 = por %p128, %p129
    %s132 = sadd.s32 %s131, 1
    %p135 = scmp.eq.s32.totalorder %s13, 3
    %p136 = scmp.ne.s32.totalorder %s131, %s133
    %p137 = scmp.eq.s32.totalorder %s13, 0
    %p138 = por %p136, %p137
    %p139 = scmp.ne.s32.totalorder %s131, %s133
    %p140 = scmp.eq.s32.totalorder %s18, 3
    %p141 = por %p139, %p140
    %p142 = scmp.ne.s32.totalorder %s133, %s134
    %p143 = scmp.eq.s32.totalorder %s18, 0
    %p144 = por %p142, %p143
    %p145 = scmp.ne.s32.totalorder %s133, %s134
    %p146 = scmp.eq.s32.totalorder %s19, 3
    %p147 = por %p145, %p146
    %p149 = scmp.ne.s32.totalorder %s134, %s148
    %p150 = scmp.eq.s32.totalorder %s19, 0
    %p151 = por %p149, %p150
    %s153 = sadd.s32 %s152, 1
    %p156 = scmp.eq.s32.totalorder %s13, 3
    %p157 = scmp.ne.s32.totalorder %s152, %s154
    %p158 = scmp.eq.s32.totalorder %s13, 0
    %p159 = por %p157, %p158
    %p160 = scmp.ne.s32.totalorder %s152, %s154
    %p161 = scmp.eq.s32.totalorder %s18, 3
    %p162 = por %p160, %p161
    %p163 = scmp.ne.s32.totalorder %s154, %s155
    %p164 = scmp.eq.s32.totalorder %s18, 0
    %p165 = por %p163, %p164
    %p166 = scmp.ne.s32.totalorder %s154, %s155
    %p167 = scmp.eq.s32.totalorder %s19, 3
    %p168 = por %p166, %p167
    %p170 = scmp.ne.s32.totalorder %s155, %s169
    %p171 = scmp.eq.s32.totalorder %s19, 0
    %p172 = por %p170, %p171
    %s173 = ssub.s32 %s13, %s20
    %p174 = scmp.eq.s32.totalorder %s173, 0
    %s176 = sadd.s32 %s175, 1
    %s177 = scalar_select %p174, %s175, %s176
    %p180 = pneg %p174
    %p181 = scmp.eq.s32.totalorder %s13, 3
    %p182 = por %p180, %p181
    %p183 = scmp.ne.s32.totalorder %s175, %s178
    %p184 = scmp.eq.s32.totalorder %s13, 0
    %p185 = por %p183, %p184
    %p186 = scmp.ne.s32.totalorder %s175, %s178
    %p187 = scmp.eq.s32.totalorder %s18, 3
    %p188 = por %p186, %p187
    %p189 = scmp.ne.s32.totalorder %s178, %s179
    %p190 = scmp.eq.s32.totalorder %s18, 0
    %p191 = por %p189, %p190
    %p192 = scmp.ne.s32.totalorder %s178, %s179
    %p193 = scmp.eq.s32.totalorder %s19, 3
    %p194 = por %p192, %p193
    %p196 = scmp.ne.s32.totalorder %s179, %s195
    %p197 = scmp.eq.s32.totalorder %s19, 0
    %p198 = por %p196, %p197
    %p199 = scmp.le.s32.totalorder 1, %s13
    %p200 = scmp.lt.s32.totalorder %s13, 5
    %p201 = pnand %p199, %p200
    %p202 = pneg %p201
    // Predicated region
    $region9: #{tpu_custom_call.1} parent=5 // pred_check
      _
    $region10: #{tpu_custom_call.1} parent=5 // pred_check_branch
      %204 = sbr.rel (%p201) target = $region12
    $region11: #{tpu_custom_call.1} parent=5 // pred_region
      %s205 = ssub.s32 %s13, 1
      // Predicated region
      $region13: #{tpu_custom_call.1} parent=11 // pred_check
        %p206 = pneg %p60
      $region14: #{tpu_custom_call.1} parent=11 // pred_check_branch
        %208 = sbr.rel (%p206) target = $region16
      $region15: #{tpu_custom_call.1} parent=11 // pred_region
        _
      $region16: #{tpu_custom_call.1} parent=11 // pred_fallthru
        _
      // Predicated region
      $region17: #{tpu_custom_call.1} parent=11 // pred_check
        %p209 = pneg %p81
      $region18: #{tpu_custom_call.1} parent=11 // pred_check_branch
        %211 = sbr.rel (%p209) target = $region20
      $region19: #{tpu_custom_call.1} parent=11 // pred_region
        _
      $region20: #{tpu_custom_call.1} parent=11 // pred_fallthru
        _
      // Predicated region
      $region21: #{tpu_custom_call.1} parent=11 // pred_check
        %p212 = pneg %p102
      $region22: #{tpu_custom_call.1} parent=11 // pred_check_branch
        %214 = sbr.rel (%p212) target = $region24
      $region23: #{tpu_custom_call.1} parent=11 // pred_region
        _
      $region24: #{tpu_custom_call.1} parent=11 // pred_fallthru
        _
      // Predicated region
      $region25: #{tpu_custom_call.1} parent=11 // pred_check
        %p215 = pneg %p123
      $region26: #{tpu_custom_call.1} parent=11 // pred_check_branch
        %217 = sbr.rel (%p215) target = $region28
      $region27: #{tpu_custom_call.1} parent=11 // pred_region
        _
      $region28: #{tpu_custom_call.1} parent=11 // pred_fallthru
        _
      // Predicated region
      $region29: #{tpu_custom_call.1} parent=11 // pred_check
        %p218 = pneg %p144
      $region30: #{tpu_custom_call.1} parent=11 // pred_check_branch
        %220 = sbr.rel (%p218) target = $region32
      $region31: #{tpu_custom_call.1} parent=11 // pred_region
        _
      $region32: #{tpu_custom_call.1} parent=11 // pred_fallthru
        _
      // Predicated region
      $region33: #{tpu_custom_call.1} parent=11 // pred_check
        %p221 = pneg %p165
      $region34: #{tpu_custom_call.1} parent=11 // pred_check_branch
        %223 = sbr.rel (%p221) target = $region36
      $region35: #{tpu_custom_call.1} parent=11 // pred_region
        _
      $region36: #{tpu_custom_call.1} parent=11 // pred_fallthru
        _
    $region12: #{tpu_custom_call.1} parent=5 // pred_fallthru
      _
    %p224 = scmp.lt.s32.totalorder %s13, 4
    // Predicated region
    $region37: #{tpu_custom_call.1} parent=5 // pred_check
      %p225 = pneg %p224
    $region38: #{tpu_custom_call.1} parent=5 // pred_check_branch
      %227 = sbr.rel (%p225) target = $region40
    $region39: #{tpu_custom_call.1} parent=5 // pred_region
      // Predicated region
      $region41: #{tpu_custom_call.1} parent=39 // pred_check
        %p228 = pneg %p33
      $region42: #{tpu_custom_call.1} parent=39 // pred_check_branch
        %230 = sbr.rel (%p228) target = $region44
      $region43: #{tpu_custom_call.1} parent=39 // pred_region
        %s231 = smul.u32 8, %s13
        %p232 = scmp.lt.s32.totalorder %s231, 31
        %s233 = scalar_select %p232, %s231, 31
        %s234 = smul.addr %s233, 8
        %s235 = scalar_lea.vmem %s0, %s234
        %s236 = smul.u32 8, %s13
      $region44: #{tpu_custom_call.1} parent=39 // pred_fallthru
        _
    $region40: #{tpu_custom_call.1} parent=5 // pred_fallthru
      _
    %p237 = scmp.le.s32.totalorder 1, %s13
    %p238 = scmp.lt.s32.totalorder %s13, 5
    %p239 = pnand %p237, %p238
    %p240 = pneg %p239
    // Predicated region
    $region45: #{tpu_custom_call.1} parent=5 // pred_check
      _
    $region46: #{tpu_custom_call.1} parent=5 // pred_check_branch
      %242 = sbr.rel (%p239) target = $region48
    $region47: #{tpu_custom_call.1} parent=5 // pred_region
      %s243 = ssub.s32 %s13, 1
      %s244 = smul.u32 8, %s18
      %p245 = scmp.lt.s32.totalorder %s244, 31
      %s246 = scalar_select %p245, %s244, 31
      %s247 = smul.addr %s246, 8
      %s248 = scalar_lea.vmem %s0, %s247
      %p249 = pneg %p39
      %p250 = pneg %p36
      %p251 = pneg %p60
      %p252 = pneg %p57
      %p253 = pneg %p81
      %p254 = pneg %p78
      %p255 = pneg %p102
      %p256 = pneg %p99
      %p257 = pneg %p123
      %p258 = pneg %p120
      %p259 = pneg %p144
      %p260 = pneg %p141
      %p261 = pneg %p165
      %p262 = pneg %p162
      %p263 = pneg %p191
      %p264 = pneg %p188
      %s265 = smul.u32 8, %s18
      %p266 = scmp.lt.s32.totalorder %s265, 31
      %s267 = scalar_select %p266, %s265, 31
      %s268 = smul.addr %s267, 8
      %s269 = scalar_lea.vmem %s7, %s268
      %s270 = smul.u32 8, %s18
      %p271 = scmp.lt.s32.totalorder %s270, 31
      %s272 = scalar_select %p271, %s270, 31
      %s273 = smul.addr %s272, 8
      %s274 = scalar_lea.vmem %s0, %s273
      %s275 = smul.u32 8, %s18
      %s276 = smul.u32 8, %s18
      %p277 = scmp.lt.s32.totalorder %s276, 31
      %s278 = scalar_select %p277, %s276, 31
      %s279 = smul.addr %s278, 8
      %s280 = scalar_lea.vmem %s7, %s279
      %s281 = smul.u32 8, %s18
      %v283 = vld [vmem:[%s274] sm:$0xff]
      %v284 = vld [vmem:[%s274 + $0x8] sm:$0xff]
      %v285 = vld [vmem:[%s274 + $0x10] sm:$0xff]
      %v286 = vld [vmem:[%s274 + $0x18] sm:$0xff]
      %v287 = vld [vmem:[%s274 + $0x20] sm:$0xff]
      %v288 = vld [vmem:[%s274 + $0x28] sm:$0xff]
      %v289 = vld [vmem:[%s274 + $0x30] sm:$0xff]
      %v290 = vld [vmem:[%s274 + $0x38] sm:$0xff]
      %299 = vrot.lane.b32.xlu0 %v283, 127
      %v300 = vpop.permute.xlu0 %299
      %301 = vrot.lane.b32.xlu0 %v284, 127
      %v302 = vpop.permute.xlu0 %301
      %303 = vrot.lane.b32.xlu0 %v285, 127
      %v304 = vpop.permute.xlu0 %303
      %305 = vrot.lane.b32.xlu0 %v286, 127
      %v306 = vpop.permute.xlu0 %305
      %307 = vrot.lane.b32.xlu0 %v287, 127
      %v308 = vpop.permute.xlu0 %307
      %309 = vrot.lane.b32.xlu0 %v288, 127
      %v310 = vpop.permute.xlu0 %309
      %311 = vrot.lane.b32.xlu0 %v289, 127
      %v312 = vpop.permute.xlu0 %311
      %313 = vrot.lane.b32.xlu0 %v290, 127
      %v314 = vpop.permute.xlu0 %313
      %v323 = vmul.f32 %v283, %v300
      %v324 = vmul.f32 %v284, %v302
      %v325 = vmul.f32 %v285, %v304
      %v326 = vmul.f32 %v286, %v306
      %v327 = vmul.f32 %v287, %v308
      %v328 = vmul.f32 %v288, %v310
      %v329 = vmul.f32 %v289, %v312
      %v330 = vmul.f32 %v290, %v314
      %v331 = vmul.f32 %v323, 1e-07
      %v332 = vmul.f32 %v324, 1e-07
      %v333 = vmul.f32 %v325, 1e-07
      %v334 = vmul.f32 %v326, 1e-07
      %v335 = vmul.f32 %v327, 1e-07
      %v336 = vmul.f32 %v328, 1e-07
      %v337 = vmul.f32 %v329, 1e-07
      %v338 = vmul.f32 %v330, 1e-07
      %339 = vrot.lane.b32.xlu0 %v283, 123
      %v340 = vpop.permute.xlu0 %339
      %341 = vrot.lane.b32.xlu0 %v284, 123
      %v342 = vpop.permute.xlu0 %341
      %343 = vrot.lane.b32.xlu0 %v285, 123
      %v344 = vpop.permute.xlu0 %343
      %345 = vrot.lane.b32.xlu0 %v286, 123
      %v346 = vpop.permute.xlu0 %345
      %347 = vrot.lane.b32.xlu0 %v287, 123
      %v348 = vpop.permute.xlu0 %347
      %349 = vrot.lane.b32.xlu0 %v288, 123
      %v350 = vpop.permute.xlu0 %349
      %351 = vrot.lane.b32.xlu0 %v289, 123
      %v352 = vpop.permute.xlu0 %351
      %353 = vrot.lane.b32.xlu0 %v290, 123
      %v354 = vpop.permute.xlu0 %353
      %v363 = vmul.f32 %v283, %v340
      %v364 = vmul.f32 %v284, %v342
      %v365 = vmul.f32 %v285, %v344
      %v366 = vmul.f32 %v286, %v346
      %v367 = vmul.f32 %v287, %v348
      %v368 = vmul.f32 %v288, %v350
      %v369 = vmul.f32 %v289, %v352
      %v370 = vmul.f32 %v290, %v354
      %v371 = vmul.f32 %v363, 1e-07
      %v372 = vmul.f32 %v364, 1e-07
      %v373 = vmul.f32 %v365, 1e-07
      %v374 = vmul.f32 %v366, 1e-07
      %v375 = vmul.f32 %v367, 1e-07
      %v376 = vmul.f32 %v368, 1e-07
      %v377 = vmul.f32 %v369, 1e-07
      %v378 = vmul.f32 %v370, 1e-07
      %v379 = vmul.f32 %v283, %v283
      %v380 = vmul.f32 %v284, %v284
      %v381 = vmul.f32 %v285, %v285
      %v382 = vmul.f32 %v286, %v286
      %v383 = vmul.f32 %v287, %v287
      %v384 = vmul.f32 %v288, %v288
      %v385 = vmul.f32 %v289, %v289
      %v386 = vmul.f32 %v290, %v290
      %395 = vrot.lane.b32.xlu0 %v379, 127
      %v396 = vpop.permute.xlu0 %395
      %397 = vrot.lane.b32.xlu0 %v380, 127
      %v398 = vpop.permute.xlu0 %397
      %399 = vrot.lane.b32.xlu0 %v381, 127
      %v400 = vpop.permute.xlu0 %399
      %401 = vrot.lane.b32.xlu0 %v382, 127
      %v402 = vpop.permute.xlu0 %401
      %403 = vrot.lane.b32.xlu0 %v383, 127
      %v404 = vpop.permute.xlu0 %403
      %405 = vrot.lane.b32.xlu0 %v384, 127
      %v406 = vpop.permute.xlu0 %405
      %407 = vrot.lane.b32.xlu0 %v385, 127
      %v408 = vpop.permute.xlu0 %407
      %409 = vrot.lane.b32.xlu0 %v386, 127
      %v410 = vpop.permute.xlu0 %409
      %v419 = vsub.f32 %v379, %v396
      %v420 = vsub.f32 %v380, %v398
      %v421 = vsub.f32 %v381, %v400
      %v422 = vsub.f32 %v382, %v402
      %v423 = vsub.f32 %v383, %v404
      %v424 = vsub.f32 %v384, %v406
      %v425 = vsub.f32 %v385, %v408
      %v426 = vsub.f32 %v386, %v410
      %v427 = vmul.f32 %v419, 1e-07
      %v428 = vmul.f32 %v420, 1e-07
      %v429 = vmul.f32 %v421, 1e-07
      %v430 = vmul.f32 %v422, 1e-07
      %v431 = vmul.f32 %v423, 1e-07
      %v432 = vmul.f32 %v424, 1e-07
      %v433 = vmul.f32 %v425, 1e-07
      %v434 = vmul.f32 %v426, 1e-07
      %v435 = vld [vmem:[%s1] sm:$0xff]
      %v436 = vld [vmem:[%s2] sm:$0x1]
      %437 = vset.pattern.permute.xlu0 0
      %438 = vperm.xlu0 %437, %v283
      %v439 = vpop.permute.xlu0 %438
      %441 = vset.pattern.permute.xlu0 0
      %442 = vperm.xlu0 %441, %v284
      %v443 = vpop.permute.xlu0 %442
      %445 = vset.pattern.permute.xlu0 0
      %446 = vperm.xlu0 %445, %v285
      %v447 = vpop.permute.xlu0 %446
      %449 = vset.pattern.permute.xlu0 0
      %450 = vperm.xlu0 %449, %v286
      %v451 = vpop.permute.xlu0 %450
      %453 = vset.pattern.permute.xlu0 0
      %454 = vperm.xlu0 %453, %v287
      %v455 = vpop.permute.xlu0 %454
      %457 = vset.pattern.permute.xlu0 0
      %458 = vperm.xlu0 %457, %v288
      %v459 = vpop.permute.xlu0 %458
      %461 = vset.pattern.permute.xlu0 0
      %462 = vperm.xlu0 %461, %v289
      %v463 = vpop.permute.xlu0 %462
      %465 = vset.pattern.permute.xlu0 0
      %466 = vperm.xlu0 %465, %v290
      %v467 = vpop.permute.xlu0 %466
      %v469 = vperm.slane %v435, 0
      %v470 = vmul.f32 %v439, %v469
      %v471 = vmul.f32 %v443, %v469
      %v472 = vmul.f32 %v447, %v469
      %v473 = vmul.f32 %v451, %v469
      %v474 = vmul.f32 %v455, %v469
      %v475 = vmul.f32 %v459, %v469
      %v476 = vmul.f32 %v463, %v469
      %v477 = vmul.f32 %v467, %v469
      %v479 = vperm.slane %v436, 0
      %v481 = vadd.f32 %v479, %v470
      %v482 = vadd.f32 %v479, %v471
      %v483 = vadd.f32 %v479, %v472
      %v484 = vadd.f32 %v479, %v473
      %v485 = vadd.f32 %v479, %v474
      %v486 = vadd.f32 %v479, %v475
      %v487 = vadd.f32 %v479, %v476
      %v488 = vadd.f32 %v479, %v477
      %489 = vset.pattern.permute.xlu0 1
      %490 = vperm.xlu0 %489, %v283
      %v491 = vpop.permute.xlu0 %490
      %493 = vset.pattern.permute.xlu0 1
      %494 = vperm.xlu0 %493, %v284
      %v495 = vpop.permute.xlu0 %494
      %497 = vset.pattern.permute.xlu0 1
      %498 = vperm.xlu0 %497, %v285
      %v499 = vpop.permute.xlu0 %498
      %501 = vset.pattern.permute.xlu0 1
      %502 = vperm.xlu0 %501, %v286
      %v503 = vpop.permute.xlu0 %502
      %505 = vset.pattern.permute.xlu0 1
      %506 = vperm.xlu0 %505, %v287
      %v507 = vpop.permute.xlu0 %506
      %509 = vset.pattern.permute.xlu0 1
      %510 = vperm.xlu0 %509, %v288
      %v511 = vpop.permute.xlu0 %510
      %513 = vset.pattern.permute.xlu0 1
      %514 = vperm.xlu0 %513, %v289
      %v515 = vpop.permute.xlu0 %514
      %517 = vset.pattern.permute.xlu0 1
      %518 = vperm.xlu0 %517, %v290
      %v519 = vpop.permute.xlu0 %518
      %v521 = vperm.slane %v435, 1
      %v522 = vmul.f32 %v491, %v521
      %v523 = vmul.f32 %v495, %v521
      %v524 = vmul.f32 %v499, %v521
      %v525 = vmul.f32 %v503, %v521
      %v526 = vmul.f32 %v507, %v521
      %v527 = vmul.f32 %v511, %v521
      %v528 = vmul.f32 %v515, %v521
      %v529 = vmul.f32 %v519, %v521
      %v530 = vadd.f32 %v481, %v522
      %v531 = vadd.f32 %v482, %v523
      %v532 = vadd.f32 %v483, %v524
      %v533 = vadd.f32 %v484, %v525
      %v534 = vadd.f32 %v485, %v526
      %v535 = vadd.f32 %v486, %v527
      %v536 = vadd.f32 %v487, %v528
      %v537 = vadd.f32 %v488, %v529
      %538 = vset.pattern.permute.xlu0 2
      %539 = vperm.xlu0 %538, %v283
      %v540 = vpop.permute.xlu0 %539
      %542 = vset.pattern.permute.xlu0 2
      %543 = vperm.xlu0 %542, %v284
      %v544 = vpop.permute.xlu0 %543
      %546 = vset.pattern.permute.xlu0 2
      %547 = vperm.xlu0 %546, %v285
      %v548 = vpop.permute.xlu0 %547
      %550 = vset.pattern.permute.xlu0 2
      %551 = vperm.xlu0 %550, %v286
      %v552 = vpop.permute.xlu0 %551
      %554 = vset.pattern.permute.xlu0 2
      %555 = vperm.xlu0 %554, %v287
      %v556 = vpop.permute.xlu0 %555
      %558 = vset.pattern.permute.xlu0 2
      %559 = vperm.xlu0 %558, %v288
      %v560 = vpop.permute.xlu0 %559
      %562 = vset.pattern.permute.xlu0 2
      %563 = vperm.xlu0 %562, %v289
      %v564 = vpop.permute.xlu0 %563
      %566 = vset.pattern.permute.xlu0 2
      %567 = vperm.xlu0 %566, %v290
      %v568 = vpop.permute.xlu0 %567
      %v570 = vperm.slane %v435, 2
      %v571 = vmul.f32 %v540, %v570
      %v572 = vmul.f32 %v544, %v570
      %v573 = vmul.f32 %v548, %v570
      %v574 = vmul.f32 %v552, %v570
      %v575 = vmul.f32 %v556, %v570
      %v576 = vmul.f32 %v560, %v570
      %v577 = vmul.f32 %v564, %v570
      %v578 = vmul.f32 %v568, %v570
      %v579 = vadd.f32 %v530, %v571
      %v580 = vadd.f32 %v531, %v572
      %v581 = vadd.f32 %v532, %v573
      %v582 = vadd.f32 %v533, %v574
      %v583 = vadd.f32 %v534, %v575
      %v584 = vadd.f32 %v535, %v576
      %v585 = vadd.f32 %v536, %v577
      %v586 = vadd.f32 %v537, %v578
      %587 = vset.pattern.permute.xlu0 3
      %588 = vperm.xlu0 %587, %v283
      %v589 = vpop.permute.xlu0 %588
      %591 = vset.pattern.permute.xlu0 3
      %592 = vperm.xlu0 %591, %v284
      %v593 = vpop.permute.xlu0 %592
      %595 = vset.pattern.permute.xlu0 3
      %596 = vperm.xlu0 %595, %v285
      %v597 = vpop.permute.xlu0 %596
      %599 = vset.pattern.permute.xlu0 3
      %600 = vperm.xlu0 %599, %v286
      %v601 = vpop.permute.xlu0 %600
      %603 = vset.pattern.permute.xlu0 3
      %604 = vperm.xlu0 %603, %v287
      %v605 = vpop.permute.xlu0 %604
      %607 = vset.pattern.permute.xlu0 3
      %608 = vperm.xlu0 %607, %v288
      %v609 = vpop.permute.xlu0 %608
      %611 = vset.pattern.permute.xlu0 3
      %612 = vperm.xlu0 %611, %v289
      %v613 = vpop.permute.xlu0 %612
      %615 = vset.pattern.permute.xlu0 3
      %616 = vperm.xlu0 %615, %v290
      %v617 = vpop.permute.xlu0 %616
      %v619 = vperm.slane %v435, 3
      %v620 = vmul.f32 %v589, %v619
      %v621 = vmul.f32 %v593, %v619
      %v622 = vmul.f32 %v597, %v619
      %v623 = vmul.f32 %v601, %v619
      %v624 = vmul.f32 %v605, %v619
      %v625 = vmul.f32 %v609, %v619
      %v626 = vmul.f32 %v613, %v619
      %v627 = vmul.f32 %v617, %v619
      %v628 = vadd.f32 %v579, %v620
      %v629 = vadd.f32 %v580, %v621
      %v630 = vadd.f32 %v581, %v622
      %v631 = vadd.f32 %v582, %v623
      %v632 = vadd.f32 %v583, %v624
      %v633 = vadd.f32 %v584, %v625
      %v634 = vadd.f32 %v585, %v626
      %v635 = vadd.f32 %v586, %v627
      %636 = vset.pattern.permute.xlu0 4
      %637 = vperm.xlu0 %636, %v283
      %v638 = vpop.permute.xlu0 %637
      %640 = vset.pattern.permute.xlu0 4
      %641 = vperm.xlu0 %640, %v284
      %v642 = vpop.permute.xlu0 %641
      %644 = vset.pattern.permute.xlu0 4
      %645 = vperm.xlu0 %644, %v285
      %v646 = vpop.permute.xlu0 %645
      %648 = vset.pattern.permute.xlu0 4
      %649 = vperm.xlu0 %648, %v286
      %v650 = vpop.permute.xlu0 %649
      %652 = vset.pattern.permute.xlu0 4
      %653 = vperm.xlu0 %652, %v287
      %v654 = vpop.permute.xlu0 %653
      %656 = vset.pattern.permute.xlu0 4
      %657 = vperm.xlu0 %656, %v288
      %v658 = vpop.permute.xlu0 %657
      %660 = vset.pattern.permute.xlu0 4
      %661 = vperm.xlu0 %660, %v289
      %v662 = vpop.permute.xlu0 %661
      %664 = vset.pattern.permute.xlu0 4
      %665 = vperm.xlu0 %664, %v290
      %v666 = vpop.permute.xlu0 %665
      %v668 = vperm.slane %v435, 4
      %v669 = vmul.f32 %v638, %v668
      %v670 = vmul.f32 %v642, %v668
      %v671 = vmul.f32 %v646, %v668
      %v672 = vmul.f32 %v650, %v668
      %v673 = vmul.f32 %v654, %v668
      %v674 = vmul.f32 %v658, %v668
      %v675 = vmul.f32 %v662, %v668
      %v676 = vmul.f32 %v666, %v668
      %v677 = vadd.f32 %v628, %v669
      %v678 = vadd.f32 %v629, %v670
      %v679 = vadd.f32 %v630, %v671
      %v680 = vadd.f32 %v631, %v672
      %v681 = vadd.f32 %v632, %v673
      %v682 = vadd.f32 %v633, %v674
      %v683 = vadd.f32 %v634, %v675
      %v684 = vadd.f32 %v635, %v676
      %686 = vset.pattern.permute.xlu0 0
      %687 = vperm.xlu0 %686, %v331
      %v688 = vpop.permute.xlu0 %687
      %691 = vset.pattern.permute.xlu0 0
      %692 = vperm.xlu0 %691, %v332
      %v693 = vpop.permute.xlu0 %692
      %696 = vset.pattern.permute.xlu0 0
      %697 = vperm.xlu0 %696, %v333
      %v698 = vpop.permute.xlu0 %697
      %701 = vset.pattern.permute.xlu0 0
      %702 = vperm.xlu0 %701, %v334
      %v703 = vpop.permute.xlu0 %702
      %706 = vset.pattern.permute.xlu0 0
      %707 = vperm.xlu0 %706, %v335
      %v708 = vpop.permute.xlu0 %707
      %711 = vset.pattern.permute.xlu0 0
      %712 = vperm.xlu0 %711, %v336
      %v713 = vpop.permute.xlu0 %712
      %716 = vset.pattern.permute.xlu0 0
      %717 = vperm.xlu0 %716, %v337
      %v718 = vpop.permute.xlu0 %717
      %721 = vset.pattern.permute.xlu0 0
      %722 = vperm.xlu0 %721, %v338
      %v723 = vpop.permute.xlu0 %722
      %v725 = vperm.slane %v435, 5
      %v726 = vmul.f32 %v688, %v725
      %v727 = vmul.f32 %v693, %v725
      %v728 = vmul.f32 %v698, %v725
      %v729 = vmul.f32 %v703, %v725
      %v730 = vmul.f32 %v708, %v725
      %v731 = vmul.f32 %v713, %v725
      %v732 = vmul.f32 %v718, %v725
      %v733 = vmul.f32 %v723, %v725
      %v734 = vadd.f32 %v677, %v726
      %v735 = vadd.f32 %v678, %v727
      %v736 = vadd.f32 %v679, %v728
      %v737 = vadd.f32 %v680, %v729
      %v738 = vadd.f32 %v681, %v730
      %v739 = vadd.f32 %v682, %v731
      %v740 = vadd.f32 %v683, %v732
      %v741 = vadd.f32 %v684, %v733
      %743 = vset.pattern.permute.xlu0 0
      %744 = vperm.xlu0 %743, %v371
      %v745 = vpop.permute.xlu0 %744
      %748 = vset.pattern.permute.xlu0 0
      %749 = vperm.xlu0 %748, %v372
      %v750 = vpop.permute.xlu0 %749
      %753 = vset.pattern.permute.xlu0 0
      %754 = vperm.xlu0 %753, %v373
      %v755 = vpop.permute.xlu0 %754
      %758 = vset.pattern.permute.xlu0 0
      %759 = vperm.xlu0 %758, %v374
      %v760 = vpop.permute.xlu0 %759
      %763 = vset.pattern.permute.xlu0 0
      %764 = vperm.xlu0 %763, %v375
      %v765 = vpop.permute.xlu0 %764
      %768 = vset.pattern.permute.xlu0 0
      %769 = vperm.xlu0 %768, %v376
      %v770 = vpop.permute.xlu0 %769
      %773 = vset.pattern.permute.xlu0 0
      %774 = vperm.xlu0 %773, %v377
      %v775 = vpop.permute.xlu0 %774
      %778 = vset.pattern.permute.xlu0 0
      %779 = vperm.xlu0 %778, %v378
      %v780 = vpop.permute.xlu0 %779
      %v782 = vperm.slane %v435, 6
      %v783 = vmul.f32 %v745, %v782
      %v784 = vmul.f32 %v750, %v782
      %v785 = vmul.f32 %v755, %v782
      %v786 = vmul.f32 %v760, %v782
      %v787 = vmul.f32 %v765, %v782
      %v788 = vmul.f32 %v770, %v782
      %v789 = vmul.f32 %v775, %v782
      %v790 = vmul.f32 %v780, %v782
      %v791 = vadd.f32 %v734, %v783
      %v792 = vadd.f32 %v735, %v784
      %v793 = vadd.f32 %v736, %v785
      %v794 = vadd.f32 %v737, %v786
      %v795 = vadd.f32 %v738, %v787
      %v796 = vadd.f32 %v739, %v788
      %v797 = vadd.f32 %v740, %v789
      %v798 = vadd.f32 %v741, %v790
      %800 = vset.pattern.permute.xlu0 0
      %801 = vperm.xlu0 %800, %v427
      %v802 = vpop.permute.xlu0 %801
      %805 = vset.pattern.permute.xlu0 0
      %806 = vperm.xlu0 %805, %v428
      %v807 = vpop.permute.xlu0 %806
      %810 = vset.pattern.permute.xlu0 0
      %811 = vperm.xlu0 %810, %v429
      %v812 = vpop.permute.xlu0 %811
      %815 = vset.pattern.permute.xlu0 0
      %816 = vperm.xlu0 %815, %v430
      %v817 = vpop.permute.xlu0 %816
      %820 = vset.pattern.permute.xlu0 0
      %821 = vperm.xlu0 %820, %v431
      %v822 = vpop.permute.xlu0 %821
      %825 = vset.pattern.permute.xlu0 0
      %826 = vperm.xlu0 %825, %v432
      %v827 = vpop.permute.xlu0 %826
      %830 = vset.pattern.permute.xlu0 0
      %831 = vperm.xlu0 %830, %v433
      %v832 = vpop.permute.xlu0 %831
      %835 = vset.pattern.permute.xlu0 0
      %836 = vperm.xlu0 %835, %v434
      %v837 = vpop.permute.xlu0 %836
      %v839 = vperm.slane %v435, 7
      %v840 = vmul.f32 %v802, %v839
      %v841 = vmul.f32 %v807, %v839
      %v842 = vmul.f32 %v812, %v839
      %v843 = vmul.f32 %v817, %v839
      %v844 = vmul.f32 %v822, %v839
      %v845 = vmul.f32 %v827, %v839
      %v846 = vmul.f32 %v832, %v839
      %v847 = vmul.f32 %v837, %v839
      %v848 = vadd.f32 %v791, %v840
      %v849 = vadd.f32 %v792, %v841
      %v850 = vadd.f32 %v793, %v842
      %v851 = vadd.f32 %v794, %v843
      %v852 = vadd.f32 %v795, %v844
      %v853 = vadd.f32 %v796, %v845
      %v854 = vadd.f32 %v797, %v846
      %v855 = vadd.f32 %v798, %v847
      %v856 = vmax.f32 %v848, 0.0
      %v857 = vmax.f32 %v849, 0.0
      %v858 = vmax.f32 %v850, 0.0
      %v859 = vmax.f32 %v851, 0.0
      %v860 = vmax.f32 %v852, 0.0
      %v861 = vmax.f32 %v853, 0.0
      %v862 = vmax.f32 %v854, 0.0
      %v863 = vmax.f32 %v855, 0.0
      %v864 = vpack.c.bf16 %v857, %v856
      %v865 = vpack.c.bf16 %v859, %v858
      %v866 = vpack.c.bf16 %v861, %v860
      %v867 = vpack.c.bf16 %v863, %v862
      %v868 = vld [vmem:[%s3] sm:$0xf]
      %v869 = vld [vmem:[%s3 + $0x4] sm:$0xf]
      %v870 = vld [vmem:[%s3 + $0x8] sm:$0xf]
      %v871 = vld [vmem:[%s3 + $0xc] sm:$0xf]
      %v872 = vld [vmem:[%s3 + $0x10] sm:$0xf]
      %v873 = vld [vmem:[%s3 + $0x14] sm:$0xf]
      %v874 = vld [vmem:[%s3 + $0x18] sm:$0xf]
      %v875 = vld [vmem:[%s3 + $0x1c] sm:$0xf]
      %v876 = vld [vmem:[%s4] sm:$0x1]
      %v878 = vperm.slane %v876, 0
      %v888 = vunpack.c.l.b16 %v868
      %v889 = vunpack.c.l.b16 %v869
      %v890 = vunpack.c.l.b16 %v870
      %v891 = vunpack.c.l.b16 %v871
      %v892 = vunpack.c.l.b16 %v872
      %v893 = vunpack.c.l.b16 %v873
      %v894 = vunpack.c.l.b16 %v874
      %v895 = vunpack.c.l.b16 %v875
      %v896 = vpack.c.b16 %v889, %v888
      %v897 = vpack.c.b16 %v891, %v890
      %v898 = vpack.c.b16 %v893, %v892
      %v899 = vpack.c.b16 %v895, %v894
      %vm904 = vcmask 523264
      %v906 = vsel %vm904, %v864, 0
      %v909 = vsel %vm904, %v865, 0
      %v912 = vsel %vm904, %v866, 0
      %v915 = vsel %vm904, %v867, 0
      %917 = vmatpush.bf16.msra.mxu0 0
      %918 = vmatpush.bf16.msra.mxu0 0
      %919 = vmatpush.bf16.msra.mxu0 0
      %920 = vmatpush.bf16.msra.mxu0 0
      %921 = vmatpush.bf16.msra.mxu0 %v899
      %922 = vmatpush.bf16.msra.mxu0 %v898
      %923 = vmatpush.bf16.msra.mxu0 %v897
      %924 = vmatpush.bf16.msra.mxu0 %v896
      %925 = vmatmul.bf16.gmra.mxu0 %v906
      %v926 = vpop.f32.mrf.mxu0
      %v927 = vadd.f32 %v878, %v926
      %v928 = vpop.f32.mrf.mxu0
      %v929 = vadd.f32 %v878, %v928
      %930 = vmatmul.bf16.gmra.mxu0 %v909
      %v931 = vpop.f32.mrf.mxu0
      %v932 = vadd.f32 %v878, %v931
      %v933 = vpop.f32.mrf.mxu0
      %v934 = vadd.f32 %v878, %v933
      %935 = vmatmul.bf16.gmra.mxu0 %v912
      %v936 = vpop.f32.mrf.mxu0
      %v937 = vadd.f32 %v878, %v936
      %v938 = vpop.f32.mrf.mxu0
      %v939 = vadd.f32 %v878, %v938
      %940 = vmatmul.bf16.gmra.mxu0 %v915
      %v941 = vpop.f32.mrf.mxu0
      %v942 = vadd.f32 %v878, %v941
      %v943 = vpop.f32.mrf.mxu0
      %v944 = vadd.f32 %v878, %v943
      %945 = vdwg.mxu0
      %v946 = vmax.f32 %v927, 0.0
      %v947 = vmax.f32 %v929, 0.0
      %v948 = vmax.f32 %v932, 0.0
      %v949 = vmax.f32 %v934, 0.0
      %v950 = vmax.f32 %v937, 0.0
      %v951 = vmax.f32 %v939, 0.0
      %v952 = vmax.f32 %v942, 0.0
      %v953 = vmax.f32 %v944, 0.0
      %v954 = vpack.c.bf16 %v947, %v946
      %v955 = vpack.c.bf16 %v949, %v948
      %v956 = vpack.c.bf16 %v951, %v950
      %v957 = vpack.c.bf16 %v953, %v952
      %v958 = vld [vmem:[%s5] sm:$0xf]
      %v959 = vld [vmem:[%s5 + $0x4] sm:$0xf]
      %v960 = vld [vmem:[%s5 + $0x8] sm:$0xf]
      %v961 = vld [vmem:[%s5 + $0xc] sm:$0xf]
      %v962 = vld [vmem:[%s6] sm:$0x1]
      %v964 = vperm.slane %v962, 0
      %v970 = vunpack.c.l.b16 %v958
      %v971 = vunpack.c.l.b16 %v959
      %v972 = vunpack.c.l.b16 %v960
      %v973 = vunpack.c.l.b16 %v961
      %v974 = vpack.c.b16 %v971, %v970
      %v975 = vpack.c.b16 %v973, %v972
      %vm978 = vcmask 261120
      %v980 = vsel %vm978, %v954, 0
      %v983 = vsel %vm978, %v955, 0
      %v986 = vsel %vm978, %v956, 0
      %v989 = vsel %vm978, %v957, 0
      %991 = vmatpush.bf16.msra.mxu0 0
      %992 = vmatpush.bf16.msra.mxu0 0
      %993 = vmatpush.bf16.msra.mxu0 0
      %994 = vmatpush.bf16.msra.mxu0 0
      %995 = vmatpush.bf16.msra.mxu0 0
      %996 = vmatpush.bf16.msra.mxu0 0
      %997 = vmatpush.bf16.msra.mxu0 %v975
      %998 = vmatpush.bf16.msra.mxu0 %v974
      %999 = vmatmul.bf16.gmra.mxu0 %v980
      %v1000 = vpop.f32.mrf.mxu0
      %v1001 = vadd.f32 %v964, %v1000
      %v1002 = vpop.f32.mrf.mxu0
      %v1003 = vadd.f32 %v964, %v1002
      %1004 = vmatmul.bf16.gmra.mxu0 %v983
      %v1005 = vpop.f32.mrf.mxu0
      %v1006 = vadd.f32 %v964, %v1005
      %v1007 = vpop.f32.mrf.mxu0
      %v1008 = vadd.f32 %v964, %v1007
      %1009 = vmatmul.bf16.gmra.mxu0 %v986
      %v1010 = vpop.f32.mrf.mxu0
      %v1011 = vadd.f32 %v964, %v1010
      %v1012 = vpop.f32.mrf.mxu0
      %v1013 = vadd.f32 %v964, %v1012
      %1014 = vmatmul.bf16.gmra.mxu0 %v989
      %v1015 = vpop.f32.mrf.mxu0
      %v1016 = vadd.f32 %v964, %v1015
      %v1017 = vpop.f32.mrf.mxu0
      %v1018 = vadd.f32 %v964, %v1017
      %1019 = vdwg.mxu0
      %vm1020 = vcmask 162816
      %1021 = vst.msk [vmem:[%s280] sm:$0xff] %vm1020, %v1001
      %1022 = vst.msk [vmem:[%s280 + $0x8] sm:$0xff] %vm1020, %v1003
      %1023 = vst.msk [vmem:[%s280 + $0x10] sm:$0xff] %vm1020, %v1006
      %1024 = vst.msk [vmem:[%s280 + $0x18] sm:$0xff] %vm1020, %v1008
      %1025 = vst.msk [vmem:[%s280 + $0x20] sm:$0xff] %vm1020, %v1011
      %1026 = vst.msk [vmem:[%s280 + $0x28] sm:$0xff] %vm1020, %v1013
      %1027 = vst.msk [vmem:[%s280 + $0x30] sm:$0xff] %vm1020, %v1016
      %1028 = vst.msk [vmem:[%s280 + $0x38] sm:$0xff] %vm1020, %v1018
      %s1029 = smul.u32 8, %s18
      %p1030 = scmp.lt.s32.totalorder %s1029, 31
      %s1031 = scalar_select %p1030, %s1029, 31
      %s1032 = smul.addr %s1031, 8
      %s1033 = scalar_lea.vmem %s7, %s1032
      // Predicated region
      $region49: #{tpu_custom_call.1} parent=47 // pred_check
        %p1034 = pneg %p188
      $region50: #{tpu_custom_call.1} parent=47 // pred_check_branch
        %1036 = sbr.rel (%p1034) target = $region52
      $region51: #{tpu_custom_call.1} parent=47 // pred_region
        %s1037 = smul.u32 8, %s18
      $region52: #{tpu_custom_call.1} parent=47 // pred_fallthru
        _
    $region48: #{tpu_custom_call.1} parent=5 // pred_fallthru
      _
    %p1038 = scmp.le.s32.totalorder 2, %s13
    // Predicated region
    $region53: #{tpu_custom_call.1} parent=5 // pred_check
      %p1039 = pneg %p1038
    $region54: #{tpu_custom_call.1} parent=5 // pred_check_branch
      %1041 = sbr.rel (%p1039) target = $region56
    $region55: #{tpu_custom_call.1} parent=5 // pred_region
      %s1042 = ssub.s32 %s13, 2
      // Predicated region
      $region57: #{tpu_custom_call.1} parent=55 // pred_check
        %p1043 = pneg %p194
      $region58: #{tpu_custom_call.1} parent=55 // pred_check_branch
        %1045 = sbr.rel (%p1043) target = $region60
      $region59: #{tpu_custom_call.1} parent=55 // pred_region
        %s1046 = smul.u32 8, %s19
        %p1047 = scmp.lt.s32.totalorder %s1046, 31
        %s1048 = scalar_select %p1047, %s1046, 31
        %s1049 = smul.addr %s1048, 8
        %s1050 = scalar_lea.vmem %s7, %s1049
      $region60: #{tpu_custom_call.1} parent=55 // pred_fallthru
        _
    $region56: #{tpu_custom_call.1} parent=5 // pred_fallthru
      _
  $region6: #{tpu_custom_call.1} parent=0 // loop_footer
    %s17 = sadd.s32 1, %s13
  $region7: #{tpu_custom_call.1} parent=0 // loop_footer_branch
    %12 = sbr.rel target = $region3
  $region8: #{tpu_custom_call.1} parent=0 // loop_exit
    _

</llo_original>
